<compile_context>
chip_gen: v6e
topology: v6e:2x2x1
jax: 0.10.0
libtpu: 0.0.40
codegen_flags: <defaults>
</compile_context>

<pallas_src>
import jax
import jax.numpy as jnp
from jax.experimental import pallas as pl
from jax.experimental.pallas import tpu as pltpu

_LANES = 128


def _cdiv(a, b):
    return -(-a // b)


def _round_up(a, b):
    return _cdiv(a, b) * b


def _make_corr_kernel(N, n_valid, block_rows, padded_elems):
    """Kernel closure with compile-time constants baked in."""
    needs_mask = padded_elems != n_valid  # static: only emit mask ops if padded

    def corr_kernel(y_true_ref, y_pred_ref, out_ref, acc_ref):
        pid = pl.program_id(0)

        # acc_ref (SMEM f32[8]): [max_t, max_p, sum_t, sum_p, sum_tp, sum_tt, sum_pp, unused]
        @pl.when(pid == 0)
        def _init():
            acc_ref[0] = jnp.float32(-jnp.inf)
            acc_ref[1] = jnp.float32(-jnp.inf)
            for k in range(2, 7):
                acc_ref[k] = jnp.float32(0.0)

        t = y_true_ref[...].astype(jnp.float32)
        p = y_pred_ref[...].astype(jnp.float32)

        if needs_mask:
            # Zero padding is neutral for the sums; mask it out of the maxes.
            row_ids = jax.lax.broadcasted_iota(jnp.int32, t.shape, 0)
            lane_ids = jax.lax.broadcasted_iota(jnp.int32, t.shape, 1)
            flat_idx = (pid * block_rows + row_ids) * _LANES + lane_ids
            valid = flat_idx < n_valid
            t_max_src = jnp.where(valid, t, -jnp.inf)
            p_max_src = jnp.where(valid, p, -jnp.inf)
        else:
            t_max_src = t
            p_max_src = p

        # Seven raw reductions on the unnormalized tile (single pass over data).
        acc_ref[0] = jnp.maximum(acc_ref[0], jnp.max(t_max_src))
        acc_ref[1] = jnp.maximum(acc_ref[1], jnp.max(p_max_src))
        acc_ref[2] += jnp.sum(t)
        acc_ref[3] += jnp.sum(p)
        acc_ref[4] += jnp.sum(t * p)
        acc_ref[5] += jnp.sum(t * t)
        acc_ref[6] += jnp.sum(p * p)

        # Scalar-only finalize: fold the normalizations into the raw sums exactly.
        @pl.when(pid == pl.num_programs(0) - 1)
        def _finalize():
            max_t = acc_ref[0]
            max_p = acc_ref[1]
            s_t = acc_ref[2]
            s_p_raw = acc_ref[3]
            s_tp = acc_ref[4]
            s_tt = acc_ref[5]
            s_pp = acc_ref[6]

            y_bool = (max_t > 0.1).astype(jnp.float32)

            # sum(y_pred / max_p) == sum(y_pred) / max_p
            s_p = s_p_raw / max_p
            d_t = s_t + 1e-10
            d_p = s_p + 1e-10

            # Normalized-map reductions, expressed on the raw sums.
            sum_prod = s_tp / (d_t * max_p * d_p)
            sum_x = s_t / d_t
            sum_y = s_p / d_p
            sum_x_sq = s_tt / (d_t * d_t) + 1e-10
            sum_y_sq = s_pp / (max_p * max_p * d_p * d_p) + 1e-10

            num = sum_prod - sum_x * sum_y / N
            den = jnp.sqrt(
                (sum_x_sq - sum_x * sum_x / N) * (sum_y_sq - sum_y * sum_y / N)
            )
            out_ref[0, 0] = y_bool * (-2.0 * num / den)

    return corr_kernel


def correlation_coefficient_loss(y_true, y_pred, *, max_block_rows=4096):
    """Pallas implementation of the PyTorch `correlation_coefficient` forward."""
    assert y_true.shape == y_pred.shape
    assert y_pred.ndim >= 2
    # N = shape[0] * shape[1], exactly like the PyTorch module.
    N = float(y_pred.shape[0] * y_pred.shape[1])

    n_valid = int(y_pred.size)
    rows = _cdiv(n_valid, _LANES)
    block_rows = min(_round_up(rows, 8), max_block_rows)
    num_blocks = _cdiv(rows, block_rows)
    padded_rows = num_blocks * block_rows
    padded_elems = padded_rows * _LANES

    def _prep(x):
        flat = x.reshape(-1)
        if padded_elems != n_valid:
            flat = jnp.pad(flat, (0, padded_elems - n_valid))
        return flat.reshape(padded_rows, _LANES)

    kernel = _make_corr_kernel(N, n_valid, block_rows, padded_elems)

    out = pl.pallas_call(
        kernel,
        out_shape=jax.ShapeDtypeStruct((1, 1), jnp.float32),
        grid_spec=pltpu.PrefetchScalarGridSpec(
            num_scalar_prefetch=0,
            grid=(num_blocks,),
            in_specs=[
                pl.BlockSpec((block_rows, _LANES), lambda i: (i, 0)),
                pl.BlockSpec((block_rows, _LANES), lambda i: (i, 0)),
            ],
            out_specs=pl.BlockSpec(memory_space=pltpu.MemorySpace.SMEM),
            scratch_shapes=[pltpu.SMEM((8,), jnp.float32)],
        ),
        compiler_params=pltpu.CompilerParams(
            dimension_semantics=("arbitrary",),
        ),
    )(_prep(y_true), _prep(y_pred))
    return out[0, 0]


def _reference(y_true, y_pred):
    """Pure-JAX transcription of the PyTorch forward, for verification."""
    y_true = y_true.astype(jnp.float32)
    y_pred = y_pred.astype(jnp.float32)
    max_y_pred = jnp.max(y_pred)
    y_pred = y_pred / max_y_pred
    y_bool = (jnp.max(y_true) > 0.1).astype(jnp.float32)
    sum_y_true = jnp.sum(y_true)
    sum_y_pred = jnp.sum(y_pred)
    y_true = y_true / (sum_y_true + 1e-10)
    y_pred = y_pred / (sum_y_pred + 1e-10)
    N = y_pred.shape[0] * y_pred.shape[1]
    sum_prod = jnp.sum(y_true * y_pred)
    sum_x = jnp.sum(y_true)
    sum_y = jnp.sum(y_pred)
    sum_x_square = jnp.sum(y_true ** 2) + 1e-10
    sum_y_square = jnp.sum(y_pred ** 2) + 1e-10
    num = sum_prod - sum_x * sum_y / N
    den = jnp.sqrt((sum_x_square - sum_x ** 2 / N) * (sum_y_square - sum_y ** 2 / N))
    return jnp.sum(y_bool * (-2.0 * num / den))


if __name__ == "__main__":
    key = jax.random.PRNGKey(0)

    # Primary case: saliency-map style NCHW inputs (B, C, H, W) = (2, 4, 16, 16).
    k1, k2 = jax.random.split(key)
    y_true = jax.random.uniform(k1, (2, 4, 16, 16), dtype=jnp.float32)
    y_pred = jax.random.uniform(k2, (2, 4, 16, 16), dtype=jnp.float32)

    loss = jax.block_until_ready(correlation_coefficient_loss(y_true, y_pred))
    ref = _reference(y_true, y_pred)
    assert jnp.allclose(loss, ref, rtol=1e-4, atol=1e-6), (loss, ref)

    # Extra smoke tests:
    #  - (2,3,50,67): element count not a multiple of 128 -> exercises pad/mask path.
    #  - (2,4,160,160) with max_block_rows=64 -> exercises the multi-block gridded
    #    accumulator path (25 grid steps).
    for shape, mbr in (((2, 3, 50, 67), 4096), ((2, 4, 160, 160), 64)):
        ka, kb = jax.random.split(jax.random.fold_in(key, shape[-1]))
        a = jax.random.uniform(ka, shape, dtype=jnp.float32)
        b = jax.random.uniform(kb, shape, dtype=jnp.float32)
        got = jax.block_until_ready(
            correlation_coefficient_loss(a, b, max_block_rows=mbr))
        want = _reference(a, b)
        assert jnp.allclose(got, want, rtol=1e-4, atol=1e-6), (shape, got, want)

    print("KERNEL_OK")
</pallas_src>

<mosaic_0001>
module attributes {stable_mosaic.version = 11 : i64} {
  func.func @corr_kernel(%arg0: i32, %arg1: memref<16x128xf32, #tpu.memory_space<vmem>>, %arg2: memref<16x128xf32, #tpu.memory_space<vmem>>, %arg3: memref<1x1xf32, #tpu.memory_space<smem>>, %arg4: memref<8xf32, #tpu.memory_space<smem>>) attributes {dimension_semantics = [#tpu.dimension_semantics<arbitrary>], iteration_bounds = array<i64: 1>, scalar_prefetch = 0 : i64, scratch_operands = 1 : i64, tpu.core_type = #tpu.core_type<tc>, window_params = [{transform_indices = @transform_0, window_bounds = array<i64: 16, 128>}, {transform_indices = @transform_1, window_bounds = array<i64: 16, 128>}, {transform_indices = @transform_2, window_bounds = array<i64: 1, 1>}]} {
    %c0_i32 = arith.constant 0 : i32
    %0 = arith.cmpi eq, %arg0, %c0_i32 : i32
    %1 = arith.extui %0 : i1 to i32
    %c0_i32_0 = arith.constant 0 : i32
    %2 = arith.cmpi ne, %1, %c0_i32_0 : i32
    scf.if %2 {
      %cst_20 = arith.constant 0xFF800000 : f32
      %c0_21 = arith.constant 0 : index
      %60 = memref.load %arg4[%c0_21] : memref<8xf32, #tpu.memory_space<smem>>
      memref.store %cst_20, %arg4[%c0_21] : memref<8xf32, #tpu.memory_space<smem>>
      %cst_22 = arith.constant 0xFF800000 : f32
      %c1_23 = arith.constant 1 : index
      %61 = memref.load %arg4[%c1_23] : memref<8xf32, #tpu.memory_space<smem>>
      memref.store %cst_22, %arg4[%c1_23] : memref<8xf32, #tpu.memory_space<smem>>
      %cst_24 = arith.constant 0.000000e+00 : f32
      %c2_25 = arith.constant 2 : index
      %62 = memref.load %arg4[%c2_25] : memref<8xf32, #tpu.memory_space<smem>>
      memref.store %cst_24, %arg4[%c2_25] : memref<8xf32, #tpu.memory_space<smem>>
      %cst_26 = arith.constant 0.000000e+00 : f32
      %c3_27 = arith.constant 3 : index
      %63 = memref.load %arg4[%c3_27] : memref<8xf32, #tpu.memory_space<smem>>
      memref.store %cst_26, %arg4[%c3_27] : memref<8xf32, #tpu.memory_space<smem>>
      %cst_28 = arith.constant 0.000000e+00 : f32
      %c4_29 = arith.constant 4 : index
      %64 = memref.load %arg4[%c4_29] : memref<8xf32, #tpu.memory_space<smem>>
      memref.store %cst_28, %arg4[%c4_29] : memref<8xf32, #tpu.memory_space<smem>>
      %cst_30 = arith.constant 0.000000e+00 : f32
      %c5_31 = arith.constant 5 : index
      %65 = memref.load %arg4[%c5_31] : memref<8xf32, #tpu.memory_space<smem>>
      memref.store %cst_30, %arg4[%c5_31] : memref<8xf32, #tpu.memory_space<smem>>
      %cst_32 = arith.constant 0.000000e+00 : f32
      %c6_33 = arith.constant 6 : index
      %66 = memref.load %arg4[%c6_33] : memref<8xf32, #tpu.memory_space<smem>>
      memref.store %cst_32, %arg4[%c6_33] : memref<8xf32, #tpu.memory_space<smem>>
    } else {
    }
    %c0 = arith.constant 0 : index
    %c0_1 = arith.constant 0 : index
    %3 = vector.load %arg1[%c0, %c0_1] : memref<16x128xf32, #tpu.memory_space<vmem>>, vector<16x128xf32>
    %c0_2 = arith.constant 0 : index
    %c0_3 = arith.constant 0 : index
    %4 = vector.load %arg2[%c0_2, %c0_3] : memref<16x128xf32, #tpu.memory_space<vmem>>, vector<16x128xf32>
    %c0_4 = arith.constant 0 : index
    %5 = memref.load %arg4[%c0_4] : memref<8xf32, #tpu.memory_space<smem>>
    %6 = vector.shape_cast %3 : vector<16x128xf32> to vector<1x16x128xf32>
    %cst = arith.constant dense<0xFF800000> : vector<1xf32>
    %7 = vector.multi_reduction <maximumf>, %6, %cst [1, 2] : vector<1x16x128xf32> to vector<1xf32>
    %8 = vector.shape_cast %7 : vector<1xf32> to vector<1x1x1xf32>
    %9 = vector.extract %8[0, 0, 0] : f32 from vector<1x1x1xf32>
    %10 = arith.maximumf %5, %9 : f32
    %c0_5 = arith.constant 0 : index
    %11 = memref.load %arg4[%c0_5] : memref<8xf32, #tpu.memory_space<smem>>
    memref.store %10, %arg4[%c0_5] : memref<8xf32, #tpu.memory_space<smem>>
    %c1 = arith.constant 1 : index
    %12 = memref.load %arg4[%c1] : memref<8xf32, #tpu.memory_space<smem>>
    %13 = vector.shape_cast %4 : vector<16x128xf32> to vector<1x16x128xf32>
    %cst_6 = arith.constant dense<0xFF800000> : vector<1xf32>
    %14 = vector.multi_reduction <maximumf>, %13, %cst_6 [1, 2] : vector<1x16x128xf32> to vector<1xf32>
    %15 = vector.shape_cast %14 : vector<1xf32> to vector<1x1x1xf32>
    %16 = vector.extract %15[0, 0, 0] : f32 from vector<1x1x1xf32>
    %17 = arith.maximumf %12, %16 : f32
    %c1_7 = arith.constant 1 : index
    %18 = memref.load %arg4[%c1_7] : memref<8xf32, #tpu.memory_space<smem>>
    memref.store %17, %arg4[%c1_7] : memref<8xf32, #tpu.memory_space<smem>>
    %c2 = arith.constant 2 : index
    %19 = memref.load %arg4[%c2] : memref<8xf32, #tpu.memory_space<smem>>
    %20 = vector.shape_cast %3 : vector<16x128xf32> to vector<1x16x128xf32>
    %cst_8 = arith.constant dense<0.000000e+00> : vector<1xf32>
    %21 = vector.multi_reduction <add>, %20, %cst_8 [1, 2] : vector<1x16x128xf32> to vector<1xf32>
    %22 = vector.shape_cast %21 : vector<1xf32> to vector<1x1x1xf32>
    %23 = vector.extract %22[0, 0, 0] : f32 from vector<1x1x1xf32>
    %24 = arith.addf %19, %23 : f32
    %c2_9 = arith.constant 2 : index
    %25 = memref.load %arg4[%c2_9] : memref<8xf32, #tpu.memory_space<smem>>
    memref.store %24, %arg4[%c2_9] : memref<8xf32, #tpu.memory_space<smem>>
    %c3 = arith.constant 3 : index
    %26 = memref.load %arg4[%c3] : memref<8xf32, #tpu.memory_space<smem>>
    %27 = vector.shape_cast %4 : vector<16x128xf32> to vector<1x16x128xf32>
    %cst_10 = arith.constant dense<0.000000e+00> : vector<1xf32>
    %28 = vector.multi_reduction <add>, %27, %cst_10 [1, 2] : vector<1x16x128xf32> to vector<1xf32>
    %29 = vector.shape_cast %28 : vector<1xf32> to vector<1x1x1xf32>
    %30 = vector.extract %29[0, 0, 0] : f32 from vector<1x1x1xf32>
    %31 = arith.addf %26, %30 : f32
    %c3_11 = arith.constant 3 : index
    %32 = memref.load %arg4[%c3_11] : memref<8xf32, #tpu.memory_space<smem>>
    memref.store %31, %arg4[%c3_11] : memref<8xf32, #tpu.memory_space<smem>>
    %c4 = arith.constant 4 : index
    %33 = memref.load %arg4[%c4] : memref<8xf32, #tpu.memory_space<smem>>
    %34 = arith.mulf %3, %4 : vector<16x128xf32>
    %35 = vector.shape_cast %34 : vector<16x128xf32> to vector<1x16x128xf32>
    %cst_12 = arith.constant dense<0.000000e+00> : vector<1xf32>
    %36 = vector.multi_reduction <add>, %35, %cst_12 [1, 2] : vector<1x16x128xf32> to vector<1xf32>
    %37 = vector.shape_cast %36 : vector<1xf32> to vector<1x1x1xf32>
    %38 = vector.extract %37[0, 0, 0] : f32 from vector<1x1x1xf32>
    %39 = arith.addf %33, %38 : f32
    %c4_13 = arith.constant 4 : index
    %40 = memref.load %arg4[%c4_13] : memref<8xf32, #tpu.memory_space<smem>>
    memref.store %39, %arg4[%c4_13] : memref<8xf32, #tpu.memory_space<smem>>
    %c5 = arith.constant 5 : index
    %41 = memref.load %arg4[%c5] : memref<8xf32, #tpu.memory_space<smem>>
    %42 = arith.mulf %3, %3 : vector<16x128xf32>
    %43 = vector.shape_cast %42 : vector<16x128xf32> to vector<1x16x128xf32>
    %cst_14 = arith.constant dense<0.000000e+00> : vector<1xf32>
    %44 = vector.multi_reduction <add>, %43, %cst_14 [1, 2] : vector<1x16x128xf32> to vector<1xf32>
    %45 = vector.shape_cast %44 : vector<1xf32> to vector<1x1x1xf32>
    %46 = vector.extract %45[0, 0, 0] : f32 from vector<1x1x1xf32>
    %47 = arith.addf %41, %46 : f32
    %c5_15 = arith.constant 5 : index
    %48 = memref.load %arg4[%c5_15] : memref<8xf32, #tpu.memory_space<smem>>
    memref.store %47, %arg4[%c5_15] : memref<8xf32, #tpu.memory_space<smem>>
    %c6 = arith.constant 6 : index
    %49 = memref.load %arg4[%c6] : memref<8xf32, #tpu.memory_space<smem>>
    %50 = arith.mulf %4, %4 : vector<16x128xf32>
    %51 = vector.shape_cast %50 : vector<16x128xf32> to vector<1x16x128xf32>
    %cst_16 = arith.constant dense<0.000000e+00> : vector<1xf32>
    %52 = vector.multi_reduction <add>, %51, %cst_16 [1, 2] : vector<1x16x128xf32> to vector<1xf32>
    %53 = vector.shape_cast %52 : vector<1xf32> to vector<1x1x1xf32>
    %54 = vector.extract %53[0, 0, 0] : f32 from vector<1x1x1xf32>
    %55 = arith.addf %49, %54 : f32
    %c6_17 = arith.constant 6 : index
    %56 = memref.load %arg4[%c6_17] : memref<8xf32, #tpu.memory_space<smem>>
    memref.store %55, %arg4[%c6_17] : memref<8xf32, #tpu.memory_space<smem>>
    %c0_i32_18 = arith.constant 0 : i32
    %57 = arith.cmpi eq, %arg0, %c0_i32_18 : i32
    %58 = arith.extui %57 : i1 to i32
    %c0_i32_19 = arith.constant 0 : i32
    %59 = arith.cmpi ne, %58, %c0_i32_19 : i32
    scf.if %59 {
      %c0_20 = arith.constant 0 : index
      %60 = memref.load %arg4[%c0_20] : memref<8xf32, #tpu.memory_space<smem>>
      %c1_21 = arith.constant 1 : index
      %61 = memref.load %arg4[%c1_21] : memref<8xf32, #tpu.memory_space<smem>>
      %c2_22 = arith.constant 2 : index
      %62 = memref.load %arg4[%c2_22] : memref<8xf32, #tpu.memory_space<smem>>
      %c3_23 = arith.constant 3 : index
      %63 = memref.load %arg4[%c3_23] : memref<8xf32, #tpu.memory_space<smem>>
      %c4_24 = arith.constant 4 : index
      %64 = memref.load %arg4[%c4_24] : memref<8xf32, #tpu.memory_space<smem>>
      %c5_25 = arith.constant 5 : index
      %65 = memref.load %arg4[%c5_25] : memref<8xf32, #tpu.memory_space<smem>>
      %c6_26 = arith.constant 6 : index
      %66 = memref.load %arg4[%c6_26] : memref<8xf32, #tpu.memory_space<smem>>
      %cst_27 = arith.constant 1.000000e-01 : f32
      %67 = arith.cmpf ogt, %60, %cst_27 : f32
      %68 = arith.extui %67 : i1 to i32
      %69 = arith.sitofp %68 : i32 to f32
      %70 = arith.divf %63, %61 : f32
      %cst_28 = arith.constant 1.000000e-10 : f32
      %71 = arith.addf %62, %cst_28 : f32
      %cst_29 = arith.constant 1.000000e-10 : f32
      %72 = arith.addf %70, %cst_29 : f32
      %73 = arith.mulf %71, %61 : f32
      %74 = arith.mulf %73, %72 : f32
      %75 = arith.divf %64, %74 : f32
      %76 = arith.divf %62, %71 : f32
      %77 = arith.divf %70, %72 : f32
      %78 = arith.mulf %71, %71 : f32
      %79 = arith.divf %65, %78 : f32
      %cst_30 = arith.constant 1.000000e-10 : f32
      %80 = arith.addf %79, %cst_30 : f32
      %81 = arith.mulf %61, %61 : f32
      %82 = arith.mulf %81, %72 : f32
      %83 = arith.mulf %82, %72 : f32
      %84 = arith.divf %66, %83 : f32
      %cst_31 = arith.constant 1.000000e-10 : f32
      %85 = arith.addf %84, %cst_31 : f32
      %86 = arith.mulf %76, %77 : f32
      %cst_32 = arith.constant 8.000000e+00 : f32
      %87 = arith.divf %86, %cst_32 : f32
      %88 = arith.subf %75, %87 : f32
      %89 = arith.mulf %76, %76 : f32
      %cst_33 = arith.constant 8.000000e+00 : f32
      %90 = arith.divf %89, %cst_33 : f32
      %91 = arith.subf %80, %90 : f32
      %92 = arith.mulf %77, %77 : f32
      %cst_34 = arith.constant 8.000000e+00 : f32
      %93 = arith.divf %92, %cst_34 : f32
      %94 = arith.subf %85, %93 : f32
      %95 = arith.mulf %91, %94 : f32
      %96 = math.sqrt %95 : f32
      %cst_35 = arith.constant -2.000000e+00 : f32
      %97 = arith.mulf %cst_35, %88 : f32
      %98 = arith.divf %97, %96 : f32
      %99 = arith.mulf %69, %98 : f32
      %c0_36 = arith.constant 0 : index
      %c0_37 = arith.constant 0 : index
      %100 = memref.load %arg3[%c0_36, %c0_37] : memref<1x1xf32, #tpu.memory_space<smem>>
      memref.store %99, %arg3[%c0_36, %c0_37] : memref<1x1xf32, #tpu.memory_space<smem>>
    } else {
    }
    return
  }
  func.func @transform_0(%arg0: i32) -> (i32, i32) {
    %c0_i32 = arith.constant 0 : i32
    %c0_i32_0 = arith.constant 0 : i32
    return %arg0, %c0_i32 : i32, i32
  }
  func.func @transform_1(%arg0: i32) -> (i32, i32) {
    %c0_i32 = arith.constant 0 : i32
    %c0_i32_0 = arith.constant 0 : i32
    return %arg0, %c0_i32 : i32, i32
  }
  func.func @transform_2(%arg0: i32) -> (i32, i32) {
    %c0_i32 = arith.constant 0 : i32
    %c0_i32_0 = arith.constant 0 : i32
    %c0_i32_1 = arith.constant 0 : i32
    return %c0_i32, %c0_i32_0 : i32, i32
  }
}

</mosaic_0001>

<llo_original>
// kernel: tpu_custom_call.1
$region0: #{tpu_custom_call.1}
  #allocation0 [shape = 'u32[]', space=smem, size = 0x4, offset = 0x4, fixed_abs, tag = 'smem constant byte address 0x4 - core index']
  #allocation1 [shape = 'u32[144,128]{1,0:T(1,128)}', space=vmem, size = 0x12000, scoped, tag = 'internal scratch']
  #allocation2 [shape = 'f32[8]{0:T(128)}', space=smem, size = 0x200, scoped, tag = 'scratch operand']
  %s0 = inlined_call_operand.hbm [shape: f32[16,128], index: 0, kind: input, shape index: {}]
  %s1 = inlined_call_operand.hbm [shape: f32[16,128], index: 1, kind: input, shape index: {}]
  %s2 = inlined_call_operand.hbm [shape: f32[1,1], index: 2, kind: output, shape index: {}]
  %s3 = sld [smem:[#allocation0]]
  $region34: #{tpu_custom_call.1} parent=0
    _
  %s5 = ssub.s32 1, %s3
  %s6 = scalar_select 0, %s5, %s3
  $region1: #{tpu_custom_call.1} parent=0
    #allocation3 [shape = 'u8[8192]{0}', space=vmem, size = 0x2000, scoped, tag = 'input window, operand 0, single buffered']
    #allocation4 [shape = 's32[1]{0}', space=sflag, size = 0x4, scoped, tag = 'scoped memory for tpu_custom_call.1']
    #allocation5 [shape = 's32[1]{0}', space=sflag, size = 0x4, scoped, tag = 'scoped memory for tpu_custom_call.1']
    #allocation6 [shape = 'u8[8192]{0}', space=vmem, size = 0x2000, scoped, tag = 'input window, operand 1, single buffered']
    #allocation7 [shape = 's32[1]{0}', space=sflag, size = 0x4, scoped, tag = 'scoped memory for tpu_custom_call.1']
    #allocation8 [shape = 'u8[512]{0}', space=smem, size = 0x200, scoped, tag = 'output window, operand 0, single buffered']
    %7 = vsyncpa [#allocation4], 0
    %8 = vsyncpa [#allocation7], 0
    %9 = vsyncpa [#allocation5], 0
    // Predicated region
    $region2: #{tpu_custom_call.1} parent=1 // pred_check
      _
    $region3: #{tpu_custom_call.1} parent=1 // pred_check_branch
      %11 = sbr.rel (0) target = $region5
    $region4: #{tpu_custom_call.1} parent=1 // pred_region
      %s13 = ssub.s32 256, 256
      %14 = vsyncadd [#allocation4], %s13
      %s15 = sshll.u32 [#allocation3], 4
      %s16 = int_to_ptr.vmem [resolvable:$true] %s15
      %21 = dma.hbm_to_vmem [thread:$0]  %s0, 256, %s16, [#allocation4], 128, 128, 8
    $region5: #{tpu_custom_call.1} parent=1 // pred_fallthru
      _
    // Predicated region
    $region6: #{tpu_custom_call.1} parent=1 // pred_check
      _
    $region7: #{tpu_custom_call.1} parent=1 // pred_check_branch
      %23 = sbr.rel (0) target = $region9
    $region8: #{tpu_custom_call.1} parent=1 // pred_region
      %s25 = ssub.s32 256, 256
      %26 = vsyncadd [#allocation7], %s25
      %s27 = sshll.u32 [#allocation6], 4
      %s28 = int_to_ptr.vmem [resolvable:$true] %s27
      %33 = dma.hbm_to_vmem [thread:$0]  %s1, 256, %s28, [#allocation7], 128, 128, 8
    $region9: #{tpu_custom_call.1} parent=1 // pred_fallthru
      _
    // Predicated region
    $region10: #{tpu_custom_call.1} parent=1 // pred_check
      _
    $region11: #{tpu_custom_call.1} parent=1 // pred_check_branch
      %35 = sbr.rel (0) target = $region13
    $region12: #{tpu_custom_call.1} parent=1 // pred_region
      %36 = dma.done [#allocation4], 256
    $region13: #{tpu_custom_call.1} parent=1 // pred_fallthru
      _
    // Predicated region
    $region14: #{tpu_custom_call.1} parent=1 // pred_check
      _
    $region15: #{tpu_custom_call.1} parent=1 // pred_check_branch
      %38 = sbr.rel (0) target = $region17
    $region16: #{tpu_custom_call.1} parent=1 // pred_region
      %39 = dma.done [#allocation7], 256
    $region17: #{tpu_custom_call.1} parent=1 // pred_fallthru
      _
    %p40 = scmp.eq.s32.totalorder 0, 0
    // Predicated region
    $region18: #{tpu_custom_call.1} parent=1 // pred_check
      %p41 = pneg %p40
    $region19: #{tpu_custom_call.1} parent=1 // pred_check_branch
      %43 = sbr.rel (%p41) target = $region21
    $region20: #{tpu_custom_call.1} parent=1 // pred_region
      %s44 = scalar_lea.smem [#allocation2], 0
      %45 = sst [smem:[%s44]] -inf
      %s46 = scalar_lea.smem [#allocation2], 1
      %47 = sst [smem:[%s46]] -inf
      %s48 = scalar_lea.smem [#allocation2], 2
      %49 = sst [smem:[%s48]] 0.0
      %s50 = scalar_lea.smem [#allocation2], 3
      %51 = sst [smem:[%s50]] 0.0
      %s52 = scalar_lea.smem [#allocation2], 4
      %53 = sst [smem:[%s52]] 0.0
      %s54 = scalar_lea.smem [#allocation2], 5
      %55 = sst [smem:[%s54]] 0.0
      %s56 = scalar_lea.smem [#allocation2], 6
      %57 = sst [smem:[%s56]] 0.0
    $region21: #{tpu_custom_call.1} parent=1 // pred_fallthru
      _
    %v58 = vld [vmem:[#allocation3] sm:$0xff]
    %v59 = vld [vmem:[#allocation3 + $0x8] sm:$0xff]
    %v60 = vld [vmem:[#allocation6] sm:$0xff]
    %v61 = vld [vmem:[#allocation6 + $0x8] sm:$0xff]
    %s62 = sld [smem:[#allocation2]]
    %v63 = vmax.f32 %v58, %v59
    %64 = vmax.xlane.f32.xlu0 %v63
    %v65 = vpop.xlane.xlu0 %64
    %v66 = vrot.slane %v65, 4
    %v67 = vmax.f32 %v65, %v66
    %v68 = vrot.slane %v67, 2
    %v69 = vmax.f32 %v67, %v68
    %v70 = vrot.slane %v69, 1
    %v71 = vmax.f32 %v69, %v70
    %s72 = vtos %v71
    %s73 = smax.f32 %s62, %s72
    %s74 = scalar_lea.smem [#allocation2], 0
    %75 = sst [smem:[%s74]] %s73
    %s76 = sld [smem:[#allocation2 + $0x1]]
    %v77 = vmax.f32 %v60, %v61
    %78 = vmax.xlane.f32.xlu0 %v77
    %v79 = vpop.xlane.xlu0 %78
    %v80 = vrot.slane %v79, 4
    %v81 = vmax.f32 %v79, %v80
    %v82 = vrot.slane %v81, 2
    %v83 = vmax.f32 %v81, %v82
    %v84 = vrot.slane %v83, 1
    %v85 = vmax.f32 %v83, %v84
    %s86 = vtos %v85
    %s87 = smax.f32 %s76, %s86
    %s88 = scalar_lea.smem [#allocation2], 1
    %89 = sst [smem:[%s88]] %s87
    %s90 = sld [smem:[#allocation2 + $0x2]]
    %v91 = vadd.f32 %v58, %v59
    %92 = vadd.xlane.f32.xlu0 %v91
    %v93 = vpop.xlane.xlu0 %92
    %v94 = vrot.slane %v93, 4
    %v95 = vadd.f32 %v93, %v94
    %v96 = vrot.slane %v95, 2
    %v97 = vadd.f32 %v95, %v96
    %v98 = vrot.slane %v97, 1
    %v99 = vadd.f32 %v97, %v98
    %s100 = vtos %v99
    %s101 = sadd.f32 %s90, %s100
    %s102 = scalar_lea.smem [#allocation2], 2
    %103 = sst [smem:[%s102]] %s101
    %s104 = sld [smem:[#allocation2 + $0x3]]
    %v105 = vadd.f32 %v60, %v61
    %106 = vadd.xlane.f32.xlu0 %v105
    %v107 = vpop.xlane.xlu0 %106
    %v108 = vrot.slane %v107, 4
    %v109 = vadd.f32 %v107, %v108
    %v110 = vrot.slane %v109, 2
    %v111 = vadd.f32 %v109, %v110
    %v112 = vrot.slane %v111, 1
    %v113 = vadd.f32 %v111, %v112
    %s114 = vtos %v113
    %s115 = sadd.f32 %s104, %s114
    %s116 = scalar_lea.smem [#allocation2], 3
    %117 = sst [smem:[%s116]] %s115
    %s118 = sld [smem:[#allocation2 + $0x4]]
    %v119 = vmul.f32 %v58, %v60
    %v120 = vmul.f32 %v59, %v61
    %v121 = vadd.f32 %v119, %v120
    %122 = vadd.xlane.f32.xlu0 %v121
    %v123 = vpop.xlane.xlu0 %122
    %v124 = vrot.slane %v123, 4
    %v125 = vadd.f32 %v123, %v124
    %v126 = vrot.slane %v125, 2
    %v127 = vadd.f32 %v125, %v126
    %v128 = vrot.slane %v127, 1
    %v129 = vadd.f32 %v127, %v128
    %s130 = vtos %v129
    %s131 = sadd.f32 %s118, %s130
    %s132 = scalar_lea.smem [#allocation2], 4
    %133 = sst [smem:[%s132]] %s131
    %s134 = sld [smem:[#allocation2 + $0x5]]
    %v135 = vmul.f32 %v58, %v58
    %v136 = vmul.f32 %v59, %v59
    %v137 = vadd.f32 %v135, %v136
    %138 = vadd.xlane.f32.xlu0 %v137
    %v139 = vpop.xlane.xlu0 %138
    %v140 = vrot.slane %v139, 4
    %v141 = vadd.f32 %v139, %v140
    %v142 = vrot.slane %v141, 2
    %v143 = vadd.f32 %v141, %v142
    %v144 = vrot.slane %v143, 1
    %v145 = vadd.f32 %v143, %v144
    %s146 = vtos %v145
    %s147 = sadd.f32 %s134, %s146
    %s148 = scalar_lea.smem [#allocation2], 5
    %149 = sst [smem:[%s148]] %s147
    %s150 = sld [smem:[#allocation2 + $0x6]]
    %v151 = vmul.f32 %v60, %v60
    %v152 = vmul.f32 %v61, %v61
    %v153 = vadd.f32 %v151, %v152
    %154 = vadd.xlane.f32.xlu0 %v153
    %v155 = vpop.xlane.xlu0 %154
    %v156 = vrot.slane %v155, 4
    %v157 = vadd.f32 %v155, %v156
    %v158 = vrot.slane %v157, 2
    %v159 = vadd.f32 %v157, %v158
    %v160 = vrot.slane %v159, 1
    %v161 = vadd.f32 %v159, %v160
    %s162 = vtos %v161
    %s163 = sadd.f32 %s150, %s162
    %s164 = scalar_lea.smem [#allocation2], 6
    %165 = sst [smem:[%s164]] %s163
    // Predicated region
    $region22: #{tpu_custom_call.1} parent=1 // pred_check
      %p166 = pneg %p40
    $region23: #{tpu_custom_call.1} parent=1 // pred_check_branch
      %168 = sbr.rel (%p166) target = $region25
    $region24: #{tpu_custom_call.1} parent=1 // pred_region
      %s169 = sld [smem:[#allocation2]]
      %s170 = sld [smem:[#allocation2 + $0x1]]
      %s171 = sld [smem:[#allocation2 + $0x2]]
      %s172 = sld [smem:[#allocation2 + $0x3]]
      %s173 = sld [smem:[#allocation2 + $0x4]]
      %s174 = sld [smem:[#allocation2 + $0x5]]
      %s175 = sld [smem:[#allocation2 + $0x6]]
      %p176 = scmp.gt.f32.partialorder %s169, 0.1
      %s177 = scalar_select %p176, 1, 0
      %s178 = scvt.s32.f32 %s177
      %v179 = vstv %s170
      %v180 = vrcp.pop %v179
      %s181 = vtos %v180
      %s182 = smul.f32 %s172, %s181
      %s183 = sadd.f32 %s171, 1e-10
      %s184 = sadd.f32 %s182, 1e-10
      %s185 = smul.f32 %s183, %s170
      %s186 = smul.f32 %s185, %s184
      %v187 = vstv %s186
      %v188 = vrcp.pop %v187
      %s189 = vtos %v188
      %s190 = smul.f32 %s173, %s189
      %v191 = vstv %s183
      %v192 = vrcp.pop %v191
      %s193 = vtos %v192
      %s194 = smul.f32 %s171, %s193
      %v195 = vstv %s184
      %v196 = vrcp.pop %v195
      %s197 = vtos %v196
      %s198 = smul.f32 %s182, %s197
      %s199 = smul.f32 %s183, %s183
      %v200 = vstv %s199
      %v201 = vrcp.pop %v200
      %s202 = vtos %v201
      %s203 = smul.f32 %s174, %s202
      %s204 = sadd.f32 %s203, 1e-10
      %s205 = smul.f32 %s170, %s170
      %s206 = smul.f32 %s205, %s184
      %s207 = smul.f32 %s206, %s184
      %v208 = vstv %s207
      %v209 = vrcp.pop %v208
      %s210 = vtos %v209
      %s211 = smul.f32 %s175, %s210
      %s212 = sadd.f32 %s211, 1e-10
      %s213 = smul.f32 %s194, %s198
      %v214 = vrcp.pop 8.0
      %s215 = vtos %v214
      %s216 = smul.f32 %s213, %s215
      %s217 = ssub.f32 %s190, %s216
      %s218 = smul.f32 %s194, %s194
      %v219 = vrcp.pop 8.0
      %s220 = vtos %v219
      %s221 = smul.f32 %s218, %s220
      %s222 = ssub.f32 %s204, %s221
      %s223 = smul.f32 %s198, %s198
      %v224 = vrcp.pop 8.0
      %s225 = vtos %v224
      %s226 = smul.f32 %s223, %s225
      %s227 = ssub.f32 %s212, %s226
      %s228 = smul.f32 %s222, %s227
      %v229 = vstv %s228
      %v230 = vrsqrt.pop %v229
      %v231 = vmul.f32 %v229, %v230
      %vm232 = vcmp.eq.f32.partialorder %v229, inf
      %v233 = vsel %vm232, %v229, %v231
      %vm234 = vcmp.eq.f32.partialorder %v229, 0.0
      %v235 = vand.u32 %v229, 2147483648
      %v236 = vsel %vm234, %v235, %v233
      %s237 = vtos %v236
      %s238 = smul.f32 %s217, -2.0
      %v239 = vstv %s237
      %v240 = vrcp.pop %v239
      %s241 = vtos %v240
      %s242 = smul.f32 %s238, %s241
      %s243 = smul.f32 %s178, %s242
      %s244 = scalar_lea.smem [#allocation8], 0
      %245 = sst [smem:[%s244]] %s243
    $region25: #{tpu_custom_call.1} parent=1 // pred_fallthru
      _
    // Predicated region
    $region26: #{tpu_custom_call.1} parent=1 // pred_check
      _
    $region27: #{tpu_custom_call.1} parent=1 // pred_check_branch
      %247 = sbr.rel (0) target = $region29
    $region28: #{tpu_custom_call.1} parent=1 // pred_region
      %s249 = ssub.s32 16, 16
      %250 = vsyncadd [#allocation5], %s249
      %253 = dma.smem_to_hbm [#allocation8], 16, %s2, [#allocation5]
    $region29: #{tpu_custom_call.1} parent=1 // pred_fallthru
      _
    // Predicated region
    $region30: #{tpu_custom_call.1} parent=1 // pred_check
      _
    $region31: #{tpu_custom_call.1} parent=1 // pred_check_branch
      %255 = sbr.rel (0) target = $region33
    $region32: #{tpu_custom_call.1} parent=1 // pred_region
      %256 = dma.done [#allocation5], 16
    $region33: #{tpu_custom_call.1} parent=1 // pred_fallthru
      _
    %257 = sfence
    %258 = vsyncpa [#allocation4], 1
    %259 = vsyncpa [#allocation7], 1
    %260 = vsyncpa [#allocation5], 1

</llo_original>
